<compile_context>
chip_gen: v7x
topology: tpu7x:2x2x1
jax: 0.10.0
libtpu: 0.0.40
codegen_flags: <defaults>
</compile_context>

<pallas_src>
import math
import functools

import numpy as np
import jax
import jax.numpy as jnp
from jax.experimental import pallas as pl
from jax.experimental.pallas import tpu as pltpu


def _round_up(x: int, m: int) -> int:
    return ((x + m - 1) // m) * m


def _cdiv(a: int, b: int) -> int:
    return -(-a // b)


def _sinusoidal_pos_emb_kernel(t_ref, tab_ref, out_ref, *, k: int):
    """One grid step:  out = sin( sum_j t[:, j] * freq_mask_j + phase ).

    t_ref   : VMEM (TB, k)       float32   (k logical timesteps packed per physical row)
    tab_ref : VMEM (k+1, k*dim)  float32   rows 0..k-1: freq table masked to lane-block j;
                                           row k: phase table ([0..0, pi/2..pi/2] tiled k times)
    out_ref : VMEM (TB, k*dim)   out_dtype (lane-dense full-width store)
    """
    arg = t_ref[:, 0:1] * tab_ref[0:1, :] + tab_ref[k:k + 1, :]
    for j in range(1, k):                       # k is a small compile-time constant (1 or 2 typ.)
        arg = arg + t_ref[:, j:j + 1] * tab_ref[j:j + 1, :]
    out_ref[...] = jnp.sin(arg).astype(out_ref.dtype)


@functools.lru_cache(maxsize=None)
def _freq_phase_table(dim: int, k: int) -> np.ndarray:
    """(k+1, k*dim) compile-time constant: k block-masked freq rows + 1 phase row."""
    half = dim // 2
    scale = math.log(10000.0) / (half - 1)
    freqs = np.exp(np.arange(half, dtype=np.float64) * -scale).astype(np.float32)
    freq_row = np.concatenate([freqs, freqs])                                    # [f.., f..]
    phase_row = np.concatenate([np.zeros(half, np.float32),
                                np.full(half, np.pi / 2.0, np.float32)])         # [0.., pi/2..]
    tab = np.zeros((k + 1, k * dim), np.float32)
    for j in range(k):
        tab[j, j * dim:(j + 1) * dim] = freq_row
    tab[k, :] = np.tile(phase_row, k)
    return tab


def sinusoidal_pos_emb(t: jax.Array, dim: int, *,
                       out_dtype=jnp.float32,
                       target_block_bytes: int = 1 << 20) -> jax.Array:
    """t: [B] -> [B, dim], matching the PyTorch SinusoidalPosEmb forward."""
    assert dim % 2 == 0, "dim must be even"
    assert dim >= 4, "dim must be >= 4 (half_dim - 1 must be nonzero)"

    out_dtype = jnp.dtype(out_dtype)
    itemsize = out_dtype.itemsize
    sub = 16 if itemsize < 4 else 8             # sublane quantum: bf16 packs 2 rows / sublane

    # Lane packing: for dim < 128, pack k timesteps per physical row so the output lane
    # width (k*dim) is a multiple of 128 -> unmasked, lane-dense stores.
    k = (128 // math.gcd(dim, 128)) if dim < 128 else 1
    KD = k * dim

    B = t.shape[0]
    R0 = _cdiv(B, k)                            # physical rows of useful data

    # Tile sizing: ~target_block_bytes of output per grid step, capped so the double-buffered
    # working set stays well inside every generation's scoped-VMEM default.
    per_row_bytes = KD * itemsize + k * 4
    vmem_rows = max(sub, (12 * 1024 * 1024) // (2 * per_row_bytes))
    tb_cap = min(max(1, target_block_bytes // (KD * itemsize)), vmem_rows)
    tb_cap = max(sub, (tb_cap // sub) * sub)

    g = _cdiv(R0, tb_cap)
    if g == 1 and R0 >= 2 * sub:
        g = 2                                   # >=2 grid steps lets v7x's 2 TCs split the batch
    tb = _round_up(_cdiv(R0, g), sub)           # physical rows per tile
    R = tb * g                                  # padded physical rows (pads < g*sub rows total)
    b_pad = R * k

    t_flat = jnp.zeros((b_pad,), jnp.float32).at[:B].set(t.astype(jnp.float32))
    t2d = t_flat.reshape(R, k)
    tab = jnp.asarray(_freq_phase_table(dim, k))        # (k+1, KD), VMEM-resident constant

    cost = pl.CostEstimate(
        flops=2 * k * R * KD,
        transcendentals=R * KD,
        bytes_accessed=R * KD * itemsize + R * k * 4 + int(tab.size) * 4,
    )

    out = pl.pallas_call(
        functools.partial(_sinusoidal_pos_emb_kernel, k=k),
        out_shape=jax.ShapeDtypeStruct((R, KD), out_dtype),
        grid=(g,),
        in_specs=[
            pl.BlockSpec((tb, k), lambda i: (i, 0)),      # timesteps for this tile
            pl.BlockSpec((k + 1, KD), lambda i: (0, 0)),  # freq/phase table (resident)
        ],
        out_specs=pl.BlockSpec((tb, KD), lambda i: (i, 0)),
        compiler_params=pltpu.CompilerParams(
            dimension_semantics=("parallel",),            # megacore / 2-TC split on v7x
        ),
        cost_estimate=cost,
    )(t2d, tab)

    # (R, k*dim) -> (b_pad, dim) is a contiguous reshape; the slice is a no-op when b_pad == B.
    return out.reshape(b_pad, dim)[:B]


def _reference_f64(t_np: np.ndarray, dim: int) -> np.ndarray:
    """Float64 numpy reference of the PyTorch forward (ground truth)."""
    half = dim // 2
    scale = math.log(10000.0) / (half - 1)
    freqs = np.exp(np.arange(half, dtype=np.float64) * -scale)
    emb = t_np.astype(np.float64)[:, None] * freqs[None, :]
    return np.concatenate([np.sin(emb), np.cos(emb)], axis=-1)


if __name__ == "__main__":
    key = jax.random.PRNGKey(0)
    key1, key2 = jax.random.split(key)

    # Case 1: typical diffusion use -- small batch of timesteps, dim=64 (< 128 exercises the
    # lane-packing path), float32 output exactly matching the PyTorch module's dtype.
    B, DIM = 8, 64
    t = jax.random.uniform(key1, (B,), dtype=jnp.float32, minval=0.0, maxval=1000.0)
    out = jax.block_until_ready(sinusoidal_pos_emb(t, DIM))
    assert out.shape == (B, DIM) and out.dtype == jnp.float32
    t64 = np.asarray(t, dtype=np.float64)
    ref = _reference_f64(t64, DIM)
    err = np.abs(np.asarray(out, dtype=np.float64) - ref)
    # sin/cos argument-reduction error in f32 scales with |t|; use a magnitude-aware tolerance.
    tol = 1e-4 + 5e-6 * np.abs(t64)[:, None]
    assert (err <= tol).all(), f"f32 mismatch vs reference: max_err={err.max():.3e}"

    # Case 2: dim >= 128 (no packing), non-tile-aligned batch, bf16 output (halved HBM writeback).
    B2, DIM2 = 20, 128
    t2 = jax.random.uniform(key2, (B2,), dtype=jnp.float32, minval=0.0, maxval=1000.0)
    out2 = jax.block_until_ready(sinusoidal_pos_emb(t2, DIM2, out_dtype=jnp.bfloat16))
    assert out2.shape == (B2, DIM2) and out2.dtype == jnp.bfloat16
    t264 = np.asarray(t2, dtype=np.float64)
    ref2 = _reference_f64(t264, DIM2)
    err2 = np.abs(np.asarray(out2, dtype=np.float64) - ref2)
    tol2 = 2e-2 + 5e-6 * np.abs(t264)[:, None]    # bf16 has ~2^-9 relative precision
    assert (err2 <= tol2).all(), f"bf16 mismatch vs reference: max_err={err2.max():.3e}"

    print("KERNEL_OK")
</pallas_src>

<mosaic_0001>
module attributes {stable_mosaic.version = 11 : i64} {
  func.func @_sinusoidal_pos_emb_kernel(%arg0: i32, %arg1: memref<8x2xf32, #tpu.memory_space<vmem>>, %arg2: memref<3x128xf32, #tpu.memory_space<vmem>>, %arg3: memref<8x128xf32, #tpu.memory_space<vmem>>) attributes {dimension_semantics = [#tpu.dimension_semantics<parallel>], iteration_bounds = array<i64: 1>, scalar_prefetch = 0 : i64, scratch_operands = 0 : i64, tpu.core_type = #tpu.core_type<tc>, window_params = [{transform_indices = @transform_0, window_bounds = array<i64: 8, 2>}, {pipeline_mode = #tpu.pipeline_mode<synchronous>, transform_indices = @transform_1, window_bounds = array<i64: 3, 128>}, {transform_indices = @transform_2, window_bounds = array<i64: 8, 128>}]} {
    %c0 = arith.constant 0 : index
    %c0_0 = arith.constant 0 : index
    %0 = vector.load %arg1[%c0, %c0_0] : memref<8x2xf32, #tpu.memory_space<vmem>>, vector<8x1xf32>
    %c0_1 = arith.constant 0 : index
    %c0_2 = arith.constant 0 : index
    %1 = vector.load %arg2[%c0_1, %c0_2] : memref<3x128xf32, #tpu.memory_space<vmem>>, vector<1x128xf32>
    %2 = vector.broadcast %0 : vector<8x1xf32> to vector<8x128xf32>
    %3 = vector.broadcast %1 : vector<1x128xf32> to vector<8x128xf32>
    %4 = arith.mulf %2, %3 : vector<8x128xf32>
    %c2 = arith.constant 2 : index
    %c0_3 = arith.constant 0 : index
    %5 = vector.load %arg2[%c2, %c0_3] : memref<3x128xf32, #tpu.memory_space<vmem>>, vector<1x128xf32>
    %6 = vector.broadcast %5 : vector<1x128xf32> to vector<8x128xf32>
    %7 = arith.addf %4, %6 : vector<8x128xf32>
    %c0_4 = arith.constant 0 : index
    %c1 = arith.constant 1 : index
    %8 = vector.load %arg1[%c0_4, %c1] : memref<8x2xf32, #tpu.memory_space<vmem>>, vector<8x1xf32>
    %c1_5 = arith.constant 1 : index
    %c0_6 = arith.constant 0 : index
    %9 = vector.load %arg2[%c1_5, %c0_6] : memref<3x128xf32, #tpu.memory_space<vmem>>, vector<1x128xf32>
    %10 = vector.broadcast %8 : vector<8x1xf32> to vector<8x128xf32>
    %11 = vector.broadcast %9 : vector<1x128xf32> to vector<8x128xf32>
    %12 = arith.mulf %10, %11 : vector<8x128xf32>
    %13 = arith.addf %7, %12 : vector<8x128xf32>
    %14 = math.sin %13 : vector<8x128xf32>
    %c0_7 = arith.constant 0 : index
    %c0_8 = arith.constant 0 : index
    %15 = vector.load %arg3[%c0_7, %c0_8] : memref<8x128xf32, #tpu.memory_space<vmem>>, vector<8x128xf32>
    tpu.vector_store %arg3[%c0_7, %c0_8], %14 {strides = array<i32>} : memref<8x128xf32, #tpu.memory_space<vmem>>, vector<8x128xf32>,
    return
  }
  func.func @transform_0(%arg0: i32) -> (i32, i32) {
    %c0_i32 = arith.constant 0 : i32
    %c0_i32_0 = arith.constant 0 : i32
    return %arg0, %c0_i32 : i32, i32
  }
  func.func @transform_1(%arg0: i32) -> (i32, i32) {
    %c0_i32 = arith.constant 0 : i32
    %c0_i32_0 = arith.constant 0 : i32
    %c0_i32_1 = arith.constant 0 : i32
    return %c0_i32, %c0_i32_0 : i32, i32
  }
  func.func @transform_2(%arg0: i32) -> (i32, i32) {
    %c0_i32 = arith.constant 0 : i32
    %c0_i32_0 = arith.constant 0 : i32
    return %arg0, %c0_i32 : i32, i32
  }
}

</mosaic_0001>

<llo_original>
// kernel: tpu_custom_call.1
$region0: #{tpu_custom_call.1}
  #allocation0 [shape = 'u32[]', space=smem, size = 0x4, offset = 0x4, fixed_abs, tag = 'smem constant byte address 0x4 - core index']
  #allocation1 [shape = 'u32[144,128]{1,0:T(1,128)}', space=vmem, size = 0x12000, scoped, tag = 'internal scratch']
  %s0 = inlined_call_operand.vmem [shape: f32[8,2], index: 0, kind: input, shape index: {}]
  %s1 = inlined_call_operand.vmem [shape: f32[3,128], index: 1, kind: input, shape index: {}]
  %s2 = inlined_call_operand.hbm [shape: f32[8,128], index: 2, kind: output, shape index: {}]
  %s3 = sld [smem:[#allocation0]]
  $region18: #{tpu_custom_call.1} parent=0
    _
  %s5 = ssub.s32 1, %s3
  %s6 = scalar_select 0, %s5, %s3
  $region1: #{tpu_custom_call.1} parent=0
    #allocation2 [shape = 'u8[4096]{0}', space=vmem, size = 0x1000, scoped, tag = 'output window, operand 0, single buffered']
    #allocation3 [shape = 's32[1]{0}', space=sflag, size = 0x4, scoped, tag = 'scoped memory for tpu_custom_call.1']
    %7 = vsyncpa [#allocation3], 0
    // Predicated region
    $region2: #{tpu_custom_call.1} parent=1 // pred_check
      _
    $region3: #{tpu_custom_call.1} parent=1 // pred_check_branch
      %9 = sbr.rel (0) target = $region5
    $region4: #{tpu_custom_call.1} parent=1 // pred_region
      _
    $region5: #{tpu_custom_call.1} parent=1 // pred_fallthru
      _
    // Predicated region
    $region6: #{tpu_custom_call.1} parent=1 // pred_check
      _
    $region7: #{tpu_custom_call.1} parent=1 // pred_check_branch
      %11 = sbr.rel (0) target = $region9
    $region8: #{tpu_custom_call.1} parent=1 // pred_region
      _
    $region9: #{tpu_custom_call.1} parent=1 // pred_fallthru
      _
    %v12 = vld [vmem:[%s0] sm:$0xff]
    %v13 = vld [vmem:[%s1] sm:$0x1]
    %15 = vset.pattern.permute.xlu0 0
    %16 = vperm.xlu0 %15, %v12
    %v17 = vpop.permute.xlu0 %16
    %v19 = vlaneseq
    %v20 = vshrl.u32 %v19, 7
    %v21 = vsub.s32 0, %v20
    %v22 = vrot.slane %v13, %v21
    %v23 = vmul.f32 %v17, %v22
    %v24 = vld [vmem:[%s1 + $0x2] sm:$0x1]
    %v25 = vlaneseq
    %v26 = vshrl.u32 %v25, 7
    %v27 = vsub.s32 0, %v26
    %v28 = vrot.slane %v24, %v27
    %v29 = vadd.f32 %v23, %v28
    %v30 = vld [vmem:[%s1 + $0x1] sm:$0x1]
    %31 = vset.pattern.permute.xlu0 1
    %32 = vperm.xlu0 %31, %v12
    %v33 = vpop.permute.xlu0 %32
    %v35 = vlaneseq
    %v36 = vshrl.u32 %v35, 7
    %v37 = vsub.s32 0, %v36
    %v38 = vrot.slane %v30, %v37
    %v39 = vmul.f32 %v33, %v38
    %v40 = vadd.f32 %v29, %v39
    %v41 = vand.u32 2147483647, %v40
    %vm42 = vcmp.le.f32.partialorder %v41, 0.7853982
    %vm43 = vcmp.lt.s32.totalorder %v40, 0
    %v44 = vand.u32 %v40, 2139095040
    %v45 = vshrl.u32 %v44, 23
    %v46 = vsub.s32 %v45, 127
    %v47 = vand.u32 2147483647, %v40
    %v48 = vand.u32 %v47, 8388607
    %v49 = vor.u32 %v48, 8388608
    %v50 = vsub.s32 0, %v49
    %v51 = vadd.s32 %v46, 1
    %vm52 = vcmp.gt.s32.totalorder %v51, 0
    %v53 = vsel %vm52, %v51, 0
    %v54 = vshrl.u32 %v53, 5
    %v55 = vand.u32 %v53, 31
    %v56 = vsub.s32 32, %v55
    %v57 = vshrl.u32 683565275, %v56
    %v58 = vshll.u32 683565275, %v55
    %v59 = vshrl.u32 2475754826, %v56
    %v60 = vor.u32 %v58, %v59
    %v61 = vshll.u32 2475754826, %v55
    %v62 = vshrl.u32 2131351028, %v56
    %v63 = vor.u32 %v61, %v62
    %v64 = vshll.u32 2131351028, %v55
    %v65 = vshrl.u32 2102212464, %v56
    %v66 = vor.u32 %v64, %v65
    %v67 = vshll.u32 2102212464, %v55
    %v68 = vshrl.u32 920167782, %v56
    %v69 = vor.u32 %v67, %v68
    %v70 = vshll.u32 920167782, %v55
    %v71 = vshrl.u32 1326507024, %v56
    %v72 = vor.u32 %v70, %v71
    %vm73 = vcmp.lt.s32.totalorder %v54, 1
    %vm74 = vcmp.lt.s32.totalorder %v54, 2
    %vm75 = vcmp.lt.s32.totalorder %v54, 3
    %vm76 = vcmp.lt.s32.totalorder %v54, 4
    %v77 = vsel %vm73, %v57, %v60
    %v78 = vsel %vm76, %v66, 2102212464
    %v79 = vsel %vm75, %v63, %v78
    %v80 = vsel %vm74, %v77, %v79
    %v81 = vsel %vm73, %v60, %v63
    %v82 = vsel %vm76, %v69, 920167782
    %v83 = vsel %vm75, %v66, %v82
    %v84 = vsel %vm74, %v81, %v83
    %v85 = vsel %vm73, %v63, %v66
    %v86 = vsel %vm76, %v72, 1326507024
    %v87 = vsel %vm75, %v69, %v86
    %v88 = vsel %vm74, %v85, %v87
    %v89 = vshll.u32 %v49, 8
    %v90 = vmul.u32.u64.compose %v89, %v88
    %v91 = vextract.low.u32 %v90
    %v92 = vextract.high.u32 %v90
    %v93 = vmul.u32.u64.compose %v89, %v84
    %v94 = vextract.low.u32 %v93
    %v95 = vextract.high.u32 %v93
    %v96 = vmul.u32 %v89, %v80
    %v97 = vadd.s32 %v92, %v94
    %vm98 = vc.u32 %v92, %v94
    %v99 = vadd.s32 %v95, 1
    %v100 = vsel %vm98, %v99, %v95
    %v101 = vadd.s32 %v96, %v100
    %v102 = vadd.s32 %v101, 536870912
    %v103 = vshrl.u32 %v102, 30
    %v104 = vshll.u32 %v103, 30
    %v105 = vsub.s32 %v101, %v104
    %vm106 = vcmp.lt.s32.totalorder %v105, 0
    %v107 = vsub.s32 0, %v105
    %v108 = vsel %vm106, %v107, %v105
    %v109 = vclz %v108
    %v110 = vsub.s32 %v109, 2
    %vm111 = vcmp.gt.s32.totalorder 0, %v110
    %v112 = vsel %vm111, 0, %v110
    %v113 = vsub.s32 32, %v112
    %v114 = vshll.u32 %v105, %v112
    %v115 = vshrl.u32 %v97, %v113
    %v116 = vor.u32 %v114, %v115
    %v117 = vsub.s32 4294967266, %v112
    %v118 = vadd.s32 %v117, 127
    %v119 = vshll.u32 %v118, 23
    %v120 = vor.u32 4788187, %v119
    %v121 = vand.u32 2147483647, %v120
    %v123 = vcvt.s32.f32 %v116
    %v124 = vmul.f32 %v123, %v121
    %v125 = vxor.u32 %v124, 2147483648
    %v126 = vsel %vm43, %v125, %v124
    %v127 = vsub.s32 4, %v103
    %v128 = vsel %vm43, %v127, %v103
    %v129 = vsel %vm42, %v40, %v126
    %v130 = vsel %vm42, 0, %v128
    %v131 = vcosq.f32.pop %v129
    %v132 = vsinq.f32.pop %v129
    %vm133 = vweird.f32 %v40
    %v134 = vadd.s32 %v130, 3
    %v135 = vand.u32 %v134, 3
    %vm136 = vcmp.lt.s32.totalorder %v135, 2
    %vm137 = vcmp.eq.s32.totalorder %v135, 0
    %v138 = vxor.u32 %v132, 2147483648
    %v139 = vsel %vm137, %v131, %v138
    %vm140 = vcmp.eq.s32.totalorder %v135, 2
    %v141 = vxor.u32 %v131, 2147483648
    %v142 = vsel %vm140, %v141, %v132
    %v143 = vsel %vm136, %v139, %v142
    %v144 = vsel %vm133, nan, %v143
    %145 = vst [vmem:[#allocation2] sm:$0xff] %v144
    // Predicated region
    $region10: #{tpu_custom_call.1} parent=1 // pred_check
      _
    $region11: #{tpu_custom_call.1} parent=1 // pred_check_branch
      %147 = sbr.rel (0) target = $region13
    $region12: #{tpu_custom_call.1} parent=1 // pred_region
      %s149 = ssub.s32 128, 128
      %150 = vsyncadd [#allocation3], %s149
      %s152 = sshll.u32 [#allocation2], 4
      %s153 = int_to_ptr.vmem [resolvable:$true] %s152
      %155 = dma.vmem_to_hbm [thread:$0]  %s153, 128, %s2, [#allocation3]
    $region13: #{tpu_custom_call.1} parent=1 // pred_fallthru
      _
    // Predicated region
    $region14: #{tpu_custom_call.1} parent=1 // pred_check
      _
    $region15: #{tpu_custom_call.1} parent=1 // pred_check_branch
      %157 = sbr.rel (0) target = $region17
    $region16: #{tpu_custom_call.1} parent=1 // pred_region
      %158 = dma.done [#allocation3], 128
    $region17: #{tpu_custom_call.1} parent=1 // pred_fallthru
      _
    %159 = vsyncpa [#allocation3], 1

</llo_original>
